<compile_context>
chip_gen: v5e
topology: v5e:2x2
jax: 0.10.0
libtpu: 0.0.40
codegen_flags: <defaults>
</compile_context>

<pallas_src>
import functools

import jax
import jax.numpy as jnp
from jax.experimental import pallas as pl
from jax.experimental.pallas import tpu as pltpu


def _round_up(a: int, b: int) -> int:
    return (a + b - 1) // b * b


# ---------------------------------------------------------------------------
# Fused kernel: K propagation rounds + lin1/relu/lin2/log_softmax on the last round.
# ---------------------------------------------------------------------------
def _sgc_kernel(a_ref, x_ref, w1t_ref, b1_ref, w2t_ref, b2_ref, o_ref, xs_ref,
                *, tm: int, n_pad: int):
    """grid = (K, num_row_tiles), K outermost.

    a_ref  : (tm, n_pad)       row tile of the dense graph matrix A
    x_ref  : (n_pad, Fin)      initial node features (block index constant -> resident)
    w1t/b1 : (Fin, Fin)/(1, Fin)
    w2t/b2 : (Fin, Fout_p)/(1, Fout_p)   lane-dense padded classifier params
    o_ref  : (tm, Fout_p)      log-softmax output tile (written only on the last round)
    xs_ref : (2*n_pad, Fin) f32  ping-pong buffer holding the propagated features
    """
    k = pl.program_id(0)          # propagation round
    i = pl.program_id(1)          # row tile
    num_k = pl.num_programs(0)

    # Load the initial node features into ping-pong slot 0 exactly once.
    @pl.when((k == 0) & (i == 0))
    def _():
        xs_ref[pl.ds(0, n_pad), :] = x_ref[...].astype(jnp.float32)

    src = k % 2
    src_off = pl.multiple_of(src * n_pad, n_pad)
    x_cur = xs_ref[pl.ds(src_off, n_pad), :]          # full X of round k (f32)

    # One propagation round for this row tile: rows [i*tm, (i+1)*tm) of A @ X.
    new_tile = jnp.dot(a_ref[...], x_cur, preferred_element_type=jnp.float32)

    # Not the last round: stash the tile for round k+1 (stays f32, never touches HBM).
    @pl.when(k < num_k - 1)
    def _():
        dst_off = pl.multiple_of((1 - src) * n_pad + i * tm, tm)
        xs_ref[pl.ds(dst_off, tm), :] = new_tile

    # Last round: fused lin1 -> relu -> lin2 -> log_softmax on the fresh tile.
    @pl.when(k == num_k - 1)
    def _():
        h = jnp.dot(new_tile, w1t_ref[...], preferred_element_type=jnp.float32)
        h = jnp.maximum(h + b1_ref[...], 0.0)
        y = jnp.dot(h, w2t_ref[...], preferred_element_type=jnp.float32) + b2_ref[...]
        # Padded logit columns carry a -1e30 bias -> they drop out of max/sum.
        m = jnp.max(y, axis=-1, keepdims=True)
        s = y - m
        lse = jnp.log(jnp.sum(jnp.exp(s), axis=-1, keepdims=True))
        o_ref[...] = (s - lse).astype(o_ref.dtype)


# ---------------------------------------------------------------------------
# Wrapper: padding, tiling, single pallas_call.
# ---------------------------------------------------------------------------
def sgc_forward(x, adj, params, K, *, tm_max=256, a_tile_bytes=8 * 1024 * 1024):
    """SGC forward: log_softmax(lin2(relu(lin1(A^K @ x))), dim=1)."""
    N, Fin = x.shape
    Fout = params["w2"].shape[0]
    f32 = jnp.float32

    if K < 1:                          # K <= 0 => propagation is the identity
        adj = jnp.eye(N, dtype=f32)
        K = 1

    # ---- tiling / padding ---------------------------------------------------
    n8 = _round_up(N, 8)
    # Row tile of A sized so the double-buffered (tm, Np) f32 slab fits the budget
    # (conservative enough for v7x's smaller VMEM; plenty of headroom on v5e/v6e).
    tm = max(8, (a_tile_bytes // (2 * n8 * 4) // 8) * 8)
    tm = min(tm, tm_max, n8)
    Np = _round_up(N, tm)
    nt = Np // tm
    Fout_p = _round_up(max(Fout, 128), 128)        # lane-dense output slab

    a_p = jnp.pad(adj.astype(f32), ((0, Np - N), (0, Np - N)))
    x_p = jnp.pad(x.astype(f32), ((0, Np - N), (0, 0)))
    w1t = params["w1"].astype(f32).T                              # (Fin, Fin)
    b1r = params["b1"].astype(f32).reshape(1, Fin)
    w2t = jnp.pad(params["w2"].astype(f32).T, ((0, 0), (0, Fout_p - Fout)))
    b2r = jnp.pad(params["b2"].astype(f32).reshape(1, Fout),
                  ((0, 0), (0, Fout_p - Fout)), constant_values=-1e30)

    # Advisory cost estimate so XLA schedules surrounding ops sensibly.
    a_passes = K if nt > 1 else 1      # single-tile A stays VMEM-resident across rounds
    cost = pl.CostEstimate(
        flops=2 * K * Np * Np * Fin + 2 * Np * Fin * Fin + 2 * Np * Fin * Fout_p,
        transcendentals=Np * (Fout_p + 1),
        bytes_accessed=4 * (a_passes * Np * Np + Np * Fin + Np * Fout_p
                            + Fin * Fin + Fin + Fin * Fout_p + Fout_p),
    )

    kernel = functools.partial(_sgc_kernel, tm=tm, n_pad=Np)
    out_slab = pl.pallas_call(
        kernel,
        out_shape=jax.ShapeDtypeStruct((Np, Fout_p), f32),
        grid_spec=pltpu.PrefetchScalarGridSpec(
            num_scalar_prefetch=0,
            grid=(K, nt),                                         # K outermost
            in_specs=[
                pl.BlockSpec((tm, Np), lambda k, i: (i, 0)),       # A row tile
                pl.BlockSpec((Np, Fin), lambda k, i: (0, 0)),      # X (resident)
                pl.BlockSpec((Fin, Fin), lambda k, i: (0, 0)),     # W1^T (resident)
                pl.BlockSpec((1, Fin), lambda k, i: (0, 0)),       # b1
                pl.BlockSpec((Fin, Fout_p), lambda k, i: (0, 0)),  # W2^T (padded)
                pl.BlockSpec((1, Fout_p), lambda k, i: (0, 0)),    # b2 (padded)
            ],
            out_specs=pl.BlockSpec((tm, Fout_p), lambda k, i: (i, 0)),
            scratch_shapes=[pltpu.VMEM((2 * Np, Fin), f32)],       # X ping-pong
        ),
        # Round k+1 tiles read the whole ping-pong scratch written by round k, so
        # neither grid axis may be sharded across TensorCores -> "arbitrary".
        compiler_params=pltpu.CompilerParams(
            dimension_semantics=("arbitrary", "arbitrary"),
            vmem_limit_bytes=32 * 1024 * 1024,
        ),
        cost_estimate=cost,
    )(a_p, x_p, w1t, b1r, w2t, b2r)

    return out_slab[:N, :Fout].astype(x.dtype)


# ---------------------------------------------------------------------------
# Pure-JAX reference for a sanity check
# ---------------------------------------------------------------------------
def sgc_reference(x, adj, params, K):
    for _ in range(K):
        x = adj @ x
    h = jnp.maximum(x @ params["w1"].T + params["b1"], 0.0)
    y = h @ params["w2"].T + params["b2"]
    return jax.nn.log_softmax(y, axis=1)


if __name__ == "__main__":
    key = jax.random.PRNGKey(0)
    N, in_features, out_features, K = 64, 32, 16, 2

    k_x, k_adj, k_w1, k_b1, k_w2, k_b2 = jax.random.split(key, 6)

    # Node features
    x = jax.random.normal(k_x, (N, in_features), dtype=jnp.float32)

    # Dense "sparse" graph matrix: random mask + self loops, row-normalized.
    mask = (jax.random.uniform(k_adj, (N, N)) < 0.1).astype(jnp.float32)
    adj = mask + jnp.eye(N, dtype=jnp.float32)
    adj = adj / jnp.sum(adj, axis=1, keepdims=True)

    # Deterministic Linear parameters (shapes per torch.nn.Linear):
    #   lin1: weight (in, in),  bias (in,)
    #   lin2: weight (out, in), bias (out,)
    params = {
        "w1": jax.random.normal(k_w1, (in_features, in_features), jnp.float32)
        * (1.0 / jnp.sqrt(in_features)),
        "b1": jax.random.normal(k_b1, (in_features,), jnp.float32) * 0.01,
        "w2": jax.random.normal(k_w2, (out_features, in_features), jnp.float32)
        * (1.0 / jnp.sqrt(in_features)),
        "b2": jax.random.normal(k_b2, (out_features,), jnp.float32) * 0.01,
    }

    out = sgc_forward(x, adj, params, K)
    out = jax.block_until_ready(out)

    ref = sgc_reference(x, adj, params, K)
    assert out.shape == (N, out_features)
    assert jnp.allclose(out, ref, atol=1e-4, rtol=1e-4), "mismatch vs reference"

    print("KERNEL_OK")
</pallas_src>

<mosaic_0001>
module attributes {stable_mosaic.version = 11 : i64} {
  func.func @_sgc_kernel(%arg0: i32, %arg1: i32, %arg2: memref<64x64xf32, #tpu.memory_space<vmem>>, %arg3: memref<64x32xf32, #tpu.memory_space<vmem>>, %arg4: memref<32x32xf32, #tpu.memory_space<vmem>>, %arg5: memref<1x32xf32, #tpu.memory_space<vmem>>, %arg6: memref<32x128xf32, #tpu.memory_space<vmem>>, %arg7: memref<1x128xf32, #tpu.memory_space<vmem>>, %arg8: memref<64x128xf32, #tpu.memory_space<vmem>>, %arg9: memref<128x32xf32, #tpu.memory_space<vmem>>) attributes {dimension_semantics = [#tpu.dimension_semantics<arbitrary>, #tpu.dimension_semantics<arbitrary>], iteration_bounds = array<i64: 2, 1>, scalar_prefetch = 0 : i64, scratch_operands = 1 : i64, tpu.core_type = #tpu.core_type<tc>, window_params = [{transform_indices = @transform_0, window_bounds = array<i64: 64, 64>}, {pipeline_mode = #tpu.pipeline_mode<synchronous>, transform_indices = @transform_1, window_bounds = array<i64: 64, 32>}, {pipeline_mode = #tpu.pipeline_mode<synchronous>, transform_indices = @transform_2, window_bounds = array<i64: 32, 32>}, {pipeline_mode = #tpu.pipeline_mode<synchronous>, transform_indices = @transform_3, window_bounds = array<i64: 1, 32>}, {pipeline_mode = #tpu.pipeline_mode<synchronous>, transform_indices = @transform_4, window_bounds = array<i64: 32, 128>}, {pipeline_mode = #tpu.pipeline_mode<synchronous>, transform_indices = @transform_5, window_bounds = array<i64: 1, 128>}, {transform_indices = @transform_6, window_bounds = array<i64: 64, 128>}]} {
    %c0_i32 = arith.constant 0 : i32
    %0 = arith.cmpi eq, %arg0, %c0_i32 : i32
    %c0_i32_0 = arith.constant 0 : i32
    %1 = arith.cmpi eq, %arg1, %c0_i32_0 : i32
    %2 = arith.andi %0, %1 : i1
    %3 = arith.extui %2 : i1 to i32
    %c0_i32_1 = arith.constant 0 : i32
    %4 = arith.cmpi ne, %3, %c0_i32_1 : i32
    scf.if %4 {
      %c0_12 = arith.constant 0 : index
      %c0_13 = arith.constant 0 : index
      %27 = vector.load %arg3[%c0_12, %c0_13] : memref<64x32xf32, #tpu.memory_space<vmem>>, vector<64x32xf32>
      %c0_14 = arith.constant 0 : index
      %c0_15 = arith.constant 0 : index
      %28 = vector.load %arg9[%c0_14, %c0_15] : memref<128x32xf32, #tpu.memory_space<vmem>>, vector<64x32xf32>
      tpu.vector_store %arg9[%c0_14, %c0_15], %27 {strides = array<i32>} : memref<128x32xf32, #tpu.memory_space<vmem>>, vector<64x32xf32>,
    } else {
    }
    %c2_i32 = arith.constant 2 : i32
    %c0_i32_2 = arith.constant 0 : i32
    %5 = arith.cmpi eq, %c2_i32, %c0_i32_2 : i32
    %c1_i32 = arith.constant 1 : i32
    %6 = arith.select %5, %c1_i32, %c2_i32 : i32
    %7 = arith.remsi %arg0, %6 : i32
    %c0_i32_3 = arith.constant 0 : i32
    %8 = arith.cmpi ne, %7, %c0_i32_3 : i32
    %c0_i32_4 = arith.constant 0 : i32
    %9 = arith.cmpi slt, %7, %c0_i32_4 : i32
    %c0_i32_5 = arith.constant 0 : i32
    %10 = arith.cmpi slt, %6, %c0_i32_5 : i32
    %11 = arith.xori %9, %10 : i1
    %12 = arith.andi %11, %8 : i1
    %13 = arith.addi %7, %6 : i32
    %14 = arith.select %12, %13, %7 : i32
    %c64_i32 = arith.constant 64 : i32
    %15 = arith.muli %14, %c64_i32 : i32
    %16 = tpu.assume_multiple %15, 64 : i32
    %17 = arith.index_cast %16 : i32 to index
    %c0 = arith.constant 0 : index
    %18 = vector.load %arg9[%17, %c0] : memref<128x32xf32, #tpu.memory_space<vmem>>, vector<64x32xf32>
    %c0_6 = arith.constant 0 : index
    %c0_7 = arith.constant 0 : index
    %19 = vector.load %arg2[%c0_6, %c0_7] : memref<64x64xf32, #tpu.memory_space<vmem>>, vector<64x64xf32>
    %cst = arith.constant dense<0.000000e+00> : vector<64x32xf32>
    %20 = tpu.matmul %19, %18, %cst {dimension_numbers = #tpu.dot_dimension_numbers<[1], [0], [0], [1], [0, 0, 1, 1], [], []>} : vector<64x64xf32>, vector<64x32xf32>, vector<64x32xf32> -> vector<64x32xf32>
    %c1_i32_8 = arith.constant 1 : i32
    %21 = arith.cmpi slt, %arg0, %c1_i32_8 : i32
    %22 = arith.extui %21 : i1 to i32
    %c0_i32_9 = arith.constant 0 : i32
    %23 = arith.cmpi ne, %22, %c0_i32_9 : i32
    scf.if %23 {
      %c1_i32_12 = arith.constant 1 : i32
      %27 = arith.subi %c1_i32_12, %14 : i32
      %c64_i32_13 = arith.constant 64 : i32
      %28 = arith.muli %27, %c64_i32_13 : i32
      %c64_i32_14 = arith.constant 64 : i32
      %29 = arith.muli %arg1, %c64_i32_14 : i32
      %30 = arith.addi %28, %29 : i32
      %31 = tpu.assume_multiple %30, 64 : i32
      %32 = arith.index_cast %31 : i32 to index
      %c0_15 = arith.constant 0 : index
      %33 = vector.load %arg9[%32, %c0_15] : memref<128x32xf32, #tpu.memory_space<vmem>>, vector<64x32xf32>
      tpu.vector_store %arg9[%32, %c0_15], %20 {strides = array<i32>} : memref<128x32xf32, #tpu.memory_space<vmem>>, vector<64x32xf32>,
    } else {
    }
    %c1_i32_10 = arith.constant 1 : i32
    %24 = arith.cmpi eq, %arg0, %c1_i32_10 : i32
    %25 = arith.extui %24 : i1 to i32
    %c0_i32_11 = arith.constant 0 : i32
    %26 = arith.cmpi ne, %25, %c0_i32_11 : i32
    scf.if %26 {
      %c0_12 = arith.constant 0 : index
      %c0_13 = arith.constant 0 : index
      %27 = vector.load %arg4[%c0_12, %c0_13] : memref<32x32xf32, #tpu.memory_space<vmem>>, vector<32x32xf32>
      %cst_14 = arith.constant dense<0.000000e+00> : vector<64x32xf32>
      %28 = tpu.matmul %20, %27, %cst_14 {dimension_numbers = #tpu.dot_dimension_numbers<[1], [0], [0], [1], [0, 0, 1, 1], [], []>} : vector<64x32xf32>, vector<32x32xf32>, vector<64x32xf32> -> vector<64x32xf32>
      %c0_15 = arith.constant 0 : index
      %c0_16 = arith.constant 0 : index
      %29 = vector.load %arg5[%c0_15, %c0_16] : memref<1x32xf32, #tpu.memory_space<vmem>>, vector<1x32xf32>
      %30 = vector.broadcast %29 : vector<1x32xf32> to vector<64x32xf32>
      %31 = arith.addf %28, %30 : vector<64x32xf32>
      %cst_17 = arith.constant 0.000000e+00 : f32
      %32 = vector.broadcast %cst_17 : f32 to vector<64x32xf32>
      %33 = arith.maximumf %31, %32 : vector<64x32xf32>
      %c0_18 = arith.constant 0 : index
      %c0_19 = arith.constant 0 : index
      %34 = vector.load %arg6[%c0_18, %c0_19] : memref<32x128xf32, #tpu.memory_space<vmem>>, vector<32x128xf32>
      %cst_20 = arith.constant dense<0.000000e+00> : vector<64x128xf32>
      %35 = tpu.matmul %33, %34, %cst_20 {dimension_numbers = #tpu.dot_dimension_numbers<[1], [0], [0], [1], [0, 0, 1, 1], [], []>} : vector<64x32xf32>, vector<32x128xf32>, vector<64x128xf32> -> vector<64x128xf32>
      %c0_21 = arith.constant 0 : index
      %c0_22 = arith.constant 0 : index
      %36 = vector.load %arg7[%c0_21, %c0_22] : memref<1x128xf32, #tpu.memory_space<vmem>>, vector<1x128xf32>
      %37 = vector.broadcast %36 : vector<1x128xf32> to vector<64x128xf32>
      %38 = arith.addf %35, %37 : vector<64x128xf32>
      %cst_23 = arith.constant dense<0xFF800000> : vector<64xf32>
      %39 = vector.multi_reduction <maximumf>, %38, %cst_23 [1] : vector<64x128xf32> to vector<64xf32>
      %40 = vector.shape_cast %39 : vector<64xf32> to vector<64x1xf32>
      %41 = vector.broadcast %40 : vector<64x1xf32> to vector<64x128xf32>
      %42 = arith.subf %38, %41 : vector<64x128xf32>
      %43 = math.exp %42 : vector<64x128xf32>
      %cst_24 = arith.constant dense<0.000000e+00> : vector<64xf32>
      %44 = vector.multi_reduction <add>, %43, %cst_24 [1] : vector<64x128xf32> to vector<64xf32>
      %45 = vector.shape_cast %44 : vector<64xf32> to vector<64x1xf32>
      %46 = math.log %45 : vector<64x1xf32>
      %47 = vector.broadcast %46 : vector<64x1xf32> to vector<64x128xf32>
      %48 = arith.subf %42, %47 : vector<64x128xf32>
      %c0_25 = arith.constant 0 : index
      %c0_26 = arith.constant 0 : index
      %49 = vector.load %arg8[%c0_25, %c0_26] : memref<64x128xf32, #tpu.memory_space<vmem>>, vector<64x128xf32>
      tpu.vector_store %arg8[%c0_25, %c0_26], %48 {strides = array<i32>} : memref<64x128xf32, #tpu.memory_space<vmem>>, vector<64x128xf32>,
    } else {
    }
    return
  }
  func.func @transform_0(%arg0: i32, %arg1: i32) -> (i32, i32) {
    %c0_i32 = arith.constant 0 : i32
    %c0_i32_0 = arith.constant 0 : i32
    return %arg1, %c0_i32 : i32, i32
  }
  func.func @transform_1(%arg0: i32, %arg1: i32) -> (i32, i32) {
    %c0_i32 = arith.constant 0 : i32
    %c0_i32_0 = arith.constant 0 : i32
    %c0_i32_1 = arith.constant 0 : i32
    return %c0_i32, %c0_i32_0 : i32, i32
  }
  func.func @transform_2(%arg0: i32, %arg1: i32) -> (i32, i32) {
    %c0_i32 = arith.constant 0 : i32
    %c0_i32_0 = arith.constant 0 : i32
    %c0_i32_1 = arith.constant 0 : i32
    return %c0_i32, %c0_i32_0 : i32, i32
  }
  func.func @transform_3(%arg0: i32, %arg1: i32) -> (i32, i32) {
    %c0_i32 = arith.constant 0 : i32
    %c0_i32_0 = arith.constant 0 : i32
    %c0_i32_1 = arith.constant 0 : i32
    return %c0_i32, %c0_i32_0 : i32, i32
  }
  func.func @transform_4(%arg0: i32, %arg1: i32) -> (i32, i32) {
    %c0_i32 = arith.constant 0 : i32
    %c0_i32_0 = arith.constant 0 : i32
    %c0_i32_1 = arith.constant 0 : i32
    return %c0_i32, %c0_i32_0 : i32, i32
  }
  func.func @transform_5(%arg0: i32, %arg1: i32) -> (i32, i32) {
    %c0_i32 = arith.constant 0 : i32
    %c0_i32_0 = arith.constant 0 : i32
    %c0_i32_1 = arith.constant 0 : i32
    return %c0_i32, %c0_i32_0 : i32, i32
  }
  func.func @transform_6(%arg0: i32, %arg1: i32) -> (i32, i32) {
    %c0_i32 = arith.constant 0 : i32
    %c0_i32_0 = arith.constant 0 : i32
    return %arg1, %c0_i32 : i32, i32
  }
}

</mosaic_0001>

<llo_original>
// kernel: tpu_custom_call.1
$region0: #{tpu_custom_call.1}
  #allocation0 [shape = 'u32[]', space=smem, size = 0x4, offset = 0x4, fixed_abs, tag = 'smem constant byte address 0x4 - core index']
  #allocation1 [shape = 'u32[72,128]{1,0:T(1,128)}', space=vmem, size = 0x9000, scoped, tag = 'internal scratch']
  #allocation2 [shape = 'f32[128,32]{1,0:T(8,128)}', space=vmem, size = 0x10000, scoped, tag = 'scratch operand']
  %s0 = inlined_call_operand.vmem [shape: f32[64,64], index: 0, kind: input, shape index: {}]
  %s1 = inlined_call_operand.vmem [shape: f32[64,32], index: 1, kind: input, shape index: {}]
  %s2 = inlined_call_operand.vmem [shape: f32[32,32], index: 2, kind: input, shape index: {}]
  %s3 = inlined_call_operand.vmem [shape: f32[1,32], index: 3, kind: input, shape index: {}]
  %s4 = inlined_call_operand.hbm [shape: f32[32,128], index: 4, kind: input, shape index: {}]
  %s5 = inlined_call_operand.vmem [shape: f32[1,128], index: 5, kind: input, shape index: {}]
  %s6 = inlined_call_operand.hbm [shape: f32[64,128], index: 6, kind: output, shape index: {}]
  %s7 = sld [smem:[#allocation0]]
  $region73: #{tpu_custom_call.1} parent=0
    _
  %s9 = ssub.s32 1, %s7
  %s10 = scalar_select 0, %s9, %s7
  $region1: #{tpu_custom_call.1} parent=0
    #allocation3 [shape = 'u8[16384]{0}', space=vmem, size = 0x4000, scoped, tag = 'input window, operand 4, single buffered']
    #allocation4 [shape = 's32[2]{0}', space=sflag, size = 0x8, scoped, tag = 'scoped memory for tpu_custom_call.1']
    #allocation5 [shape = 's32[2]{0}', space=sflag, size = 0x8, scoped, tag = 'scoped memory for tpu_custom_call.1']
    #allocation6 [shape = 'u8[32768]{0}', space=vmem, size = 0x8000, scoped, tag = 'output window, operand 0, single buffered']
    %11 = vsyncpa [#allocation4], 0
    %12 = vsyncpa [#allocation5], 0
    loop: start=0, step=1, limit=4
    $region2: #{tpu_custom_call.1} parent=1 // loop_pre_header
      _
    $region3: #{tpu_custom_call.1} parent=1 // loop_header
      %s14 = sphi 0, %s18
      %p15 = scmp.ge.s32.totalorder %s14, 4
      %s21 = sphi 0, %s33
      %s22 = sphi 0, %s29
      %s23 = sphi 0, %s21
      %s24 = sphi 0, %s22
      %s25 = sphi 0, %s23
      %s26 = sphi 0, %s24
      %s36 = sphi 0, %s38
      %s39 = sphi 0, %s36
      %s40 = sphi 0, %s39
      %s56 = sphi 0, %s40
      %s60 = sphi 0, %s60
      %s62 = sphi 0, %s60
      %s63 = sphi 0, %s62
      %s77 = sphi 0, %s63
      %s81 = sphi 0, %s81
      %s83 = sphi 0, %s81
      %s84 = sphi 0, %s83
      %s98 = sphi 0, %s84
      %s102 = sphi 0, %s102
      %s104 = sphi 0, %s102
      %s105 = sphi 0, %s104
      %s119 = sphi 0, %s105
      %s123 = sphi 0, %s123
      %s125 = sphi 0, %s123
      %s126 = sphi 0, %s125
      %s140 = sphi 0, %s126
      %s144 = sphi 0, %s144
      %s146 = sphi 0, %s144
      %s147 = sphi 0, %s146
      %s161 = sphi 0, %s147
      %s167 = sphi 0, %s169
      %s170 = sphi 0, %s167
      %s171 = sphi 0, %s170
      %s187 = sphi 0, %s171
    $region4: #{tpu_custom_call.1} parent=1 // loop_header_branch
      %17 = sbr.rel (%p15) target = $region8
    $region5: #{tpu_custom_call.1} parent=1 // loop_body
      %s19 = ssub.s32 %s14, 1
      %s20 = ssub.s32 %s14, 2
      %s27 = sadd.s32 1, %s22
      %p28 = scmp.ge.s32.totalorder %s27, 1
      %s29 = scalar_select %p28, 0, %s27
      %s30 = sadd.s32 1, %s21
      %s31 = scalar_select %p28, %s30, %s21
      %p32 = scmp.ge.s32.totalorder %s31, 2
      %s33 = scalar_select %p32, 0, %s31
      %s34 = ssub.s32 %s22, %s29
      %p35 = scmp.eq.s32.totalorder %s34, 0
      %s37 = sadd.s32 %s36, 1
      %s38 = scalar_select %p35, %s36, %s37
      %p41 = pneg %p35
      %p42 = scmp.eq.s32.totalorder %s14, 1
      %p43 = por %p41, %p42
      %p44 = scmp.ne.s32.totalorder %s36, %s39
      %p45 = scmp.eq.s32.totalorder %s14, 0
      %p46 = por %p44, %p45
      %p47 = scmp.ne.s32.totalorder %s36, %s39
      %p48 = scmp.eq.s32.totalorder %s19, 1
      %p49 = por %p47, %p48
      %p50 = scmp.ne.s32.totalorder %s39, %s40
      %p51 = scmp.eq.s32.totalorder %s19, 0
      %p52 = por %p50, %p51
      %p53 = scmp.ne.s32.totalorder %s39, %s40
      %p54 = scmp.eq.s32.totalorder %s20, 1
      %p55 = por %p53, %p54
      %p57 = scmp.ne.s32.totalorder %s40, %s56
      %p58 = scmp.eq.s32.totalorder %s20, 0
      %p59 = por %p57, %p58
      %s61 = sadd.s32 %s60, 1
      %p64 = scmp.eq.s32.totalorder %s14, 1
      %p65 = scmp.ne.s32.totalorder %s60, %s62
      %p66 = scmp.eq.s32.totalorder %s14, 0
      %p67 = por %p65, %p66
      %p68 = scmp.ne.s32.totalorder %s60, %s62
      %p69 = scmp.eq.s32.totalorder %s19, 1
      %p70 = por %p68, %p69
      %p71 = scmp.ne.s32.totalorder %s62, %s63
      %p72 = scmp.eq.s32.totalorder %s19, 0
      %p73 = por %p71, %p72
      %p74 = scmp.ne.s32.totalorder %s62, %s63
      %p75 = scmp.eq.s32.totalorder %s20, 1
      %p76 = por %p74, %p75
      %p78 = scmp.ne.s32.totalorder %s63, %s77
      %p79 = scmp.eq.s32.totalorder %s20, 0
      %p80 = por %p78, %p79
      %s82 = sadd.s32 %s81, 1
      %p85 = scmp.eq.s32.totalorder %s14, 1
      %p86 = scmp.ne.s32.totalorder %s81, %s83
      %p87 = scmp.eq.s32.totalorder %s14, 0
      %p88 = por %p86, %p87
      %p89 = scmp.ne.s32.totalorder %s81, %s83
      %p90 = scmp.eq.s32.totalorder %s19, 1
      %p91 = por %p89, %p90
      %p92 = scmp.ne.s32.totalorder %s83, %s84
      %p93 = scmp.eq.s32.totalorder %s19, 0
      %p94 = por %p92, %p93
      %p95 = scmp.ne.s32.totalorder %s83, %s84
      %p96 = scmp.eq.s32.totalorder %s20, 1
      %p97 = por %p95, %p96
      %p99 = scmp.ne.s32.totalorder %s84, %s98
      %p100 = scmp.eq.s32.totalorder %s20, 0
      %p101 = por %p99, %p100
      %s103 = sadd.s32 %s102, 1
      %p106 = scmp.eq.s32.totalorder %s14, 1
      %p107 = scmp.ne.s32.totalorder %s102, %s104
      %p108 = scmp.eq.s32.totalorder %s14, 0
      %p109 = por %p107, %p108
      %p110 = scmp.ne.s32.totalorder %s102, %s104
      %p111 = scmp.eq.s32.totalorder %s19, 1
      %p112 = por %p110, %p111
      %p113 = scmp.ne.s32.totalorder %s104, %s105
      %p114 = scmp.eq.s32.totalorder %s19, 0
      %p115 = por %p113, %p114
      %p116 = scmp.ne.s32.totalorder %s104, %s105
      %p117 = scmp.eq.s32.totalorder %s20, 1
      %p118 = por %p116, %p117
      %p120 = scmp.ne.s32.totalorder %s105, %s119
      %p121 = scmp.eq.s32.totalorder %s20, 0
      %p122 = por %p120, %p121
      %s124 = sadd.s32 %s123, 1
      %p127 = scmp.eq.s32.totalorder %s14, 1
      %p128 = scmp.ne.s32.totalorder %s123, %s125
      %p129 = scmp.eq.s32.totalorder %s14, 0
      %p130 = por %p128, %p129
      %p131 = scmp.ne.s32.totalorder %s123, %s125
      %p132 = scmp.eq.s32.totalorder %s19, 1
      %p133 = por %p131, %p132
      %p134 = scmp.ne.s32.totalorder %s125, %s126
      %p135 = scmp.eq.s32.totalorder %s19, 0
      %p136 = por %p134, %p135
      %p137 = scmp.ne.s32.totalorder %s125, %s126
      %p138 = scmp.eq.s32.totalorder %s20, 1
      %p139 = por %p137, %p138
      %p141 = scmp.ne.s32.totalorder %s126, %s140
      %p142 = scmp.eq.s32.totalorder %s20, 0
      %p143 = por %p141, %p142
      %s145 = sadd.s32 %s144, 1
      %p148 = scmp.eq.s32.totalorder %s14, 1
      %p149 = scmp.ne.s32.totalorder %s144, %s146
      %p150 = scmp.eq.s32.totalorder %s14, 0
      %p151 = por %p149, %p150
      %p152 = scmp.ne.s32.totalorder %s144, %s146
      %p153 = scmp.eq.s32.totalorder %s19, 1
      %p154 = por %p152, %p153
      %p155 = scmp.ne.s32.totalorder %s146, %s147
      %p156 = scmp.eq.s32.totalorder %s19, 0
      %p157 = por %p155, %p156
      %p158 = scmp.ne.s32.totalorder %s146, %s147
      %p159 = scmp.eq.s32.totalorder %s20, 1
      %p160 = por %p158, %p159
      %p162 = scmp.ne.s32.totalorder %s147, %s161
      %p163 = scmp.eq.s32.totalorder %s20, 0
      %p164 = por %p162, %p163
      %s165 = ssub.s32 %s22, %s29
      %p166 = scmp.eq.s32.totalorder %s165, 0
      %s168 = sadd.s32 %s167, 1
      %s169 = scalar_select %p166, %s167, %s168
      %p172 = pneg %p166
      %p173 = scmp.eq.s32.totalorder %s14, 1
      %p174 = por %p172, %p173
      %p175 = scmp.ne.s32.totalorder %s167, %s170
      %p176 = scmp.eq.s32.totalorder %s14, 0
      %p177 = por %p175, %p176
      %p178 = scmp.ne.s32.totalorder %s167, %s170
      %p179 = scmp.eq.s32.totalorder %s19, 1
      %p180 = por %p178, %p179
      %p181 = scmp.ne.s32.totalorder %s170, %s171
      %p182 = scmp.eq.s32.totalorder %s19, 0
      %p183 = por %p181, %p182
      %p184 = scmp.ne.s32.totalorder %s170, %s171
      %p185 = scmp.eq.s32.totalorder %s20, 1
      %p186 = por %p184, %p185
      %p188 = scmp.ne.s32.totalorder %s171, %s187
      %p189 = scmp.eq.s32.totalorder %s20, 0
      %p190 = por %p188, %p189
      %p191 = scmp.le.s32.totalorder 1, %s14
      %p192 = scmp.lt.s32.totalorder %s14, 3
      %p193 = pnand %p191, %p192
      %p194 = pneg %p193
      // Predicated region
      $region9: #{tpu_custom_call.1} parent=5 // pred_check
        _
      $region10: #{tpu_custom_call.1} parent=5 // pred_check_branch
        %196 = sbr.rel (%p193) target = $region12
      $region11: #{tpu_custom_call.1} parent=5 // pred_region
        %s197 = ssub.s32 %s14, 1
        // Predicated region
        $region13: #{tpu_custom_call.1} parent=11 // pred_check
          %p198 = pneg %p52
        $region14: #{tpu_custom_call.1} parent=11 // pred_check_branch
          %200 = sbr.rel (%p198) target = $region16
        $region15: #{tpu_custom_call.1} parent=11 // pred_region
          %s201 = smul.u32 8, %s24
          %p202 = scmp.lt.s32.totalorder %s201, 7
          %s203 = scalar_select %p202, %s201, 7
          %s204 = smul.addr %s203, 8
          %s205 = scalar_lea.vmem %s0, %s204
          %s206 = smul.u32 8, %s24
        $region16: #{tpu_custom_call.1} parent=11 // pred_fallthru
          _
        // Predicated region
        $region17: #{tpu_custom_call.1} parent=11 // pred_check
          %p207 = pneg %p73
        $region18: #{tpu_custom_call.1} parent=11 // pred_check_branch
          %209 = sbr.rel (%p207) target = $region20
        $region19: #{tpu_custom_call.1} parent=11 // pred_region
          _
        $region20: #{tpu_custom_call.1} parent=11 // pred_fallthru
          _
        // Predicated region
        $region21: #{tpu_custom_call.1} parent=11 // pred_check
          %p210 = pneg %p94
        $region22: #{tpu_custom_call.1} parent=11 // pred_check_branch
          %212 = sbr.rel (%p210) target = $region24
        $region23: #{tpu_custom_call.1} parent=11 // pred_region
          _
        $region24: #{tpu_custom_call.1} parent=11 // pred_fallthru
          _
        // Predicated region
        $region25: #{tpu_custom_call.1} parent=11 // pred_check
          %p213 = pneg %p115
        $region26: #{tpu_custom_call.1} parent=11 // pred_check_branch
          %215 = sbr.rel (%p213) target = $region28
        $region27: #{tpu_custom_call.1} parent=11 // pred_region
          _
        $region28: #{tpu_custom_call.1} parent=11 // pred_fallthru
          _
        // Predicated region
        $region29: #{tpu_custom_call.1} parent=11 // pred_check
          %p216 = pneg %p136
        $region30: #{tpu_custom_call.1} parent=11 // pred_check_branch
          %218 = sbr.rel (%p216) target = $region32
        $region31: #{tpu_custom_call.1} parent=11 // pred_region
          %220 = vsyncadd [#allocation4], 0
          %s221 = sshll.u32 %s4, 4
          %s222 = int_to_ptr.hbm [resolvable:$true] %s221
          %s223 = sshll.u32 [#allocation3], 4
          %s224 = int_to_ptr.vmem [resolvable:$true] %s223
          %229 = dma.hbm_to_vmem [thread:$0]  %s222, 512, %s224, [#allocation4], 128, 128, 8
        $region32: #{tpu_custom_call.1} parent=11 // pred_fallthru
          _
        // Predicated region
        $region33: #{tpu_custom_call.1} parent=11 // pred_check
          %p230 = pneg %p157
        $region34: #{tpu_custom_call.1} parent=11 // pred_check_branch
          %232 = sbr.rel (%p230) target = $region36
        $region35: #{tpu_custom_call.1} parent=11 // pred_region
          _
        $region36: #{tpu_custom_call.1} parent=11 // pred_fallthru
          _
      $region12: #{tpu_custom_call.1} parent=5 // pred_fallthru
        _
      %p233 = scmp.lt.s32.totalorder %s14, 2
      // Predicated region
      $region37: #{tpu_custom_call.1} parent=5 // pred_check
        %p234 = pneg %p233
      $region38: #{tpu_custom_call.1} parent=5 // pred_check_branch
        %236 = sbr.rel (%p234) target = $region40
      $region39: #{tpu_custom_call.1} parent=5 // pred_region
        _
      $region40: #{tpu_custom_call.1} parent=5 // pred_fallthru
        _
      %p237 = scmp.le.s32.totalorder 1, %s14
      %p238 = scmp.lt.s32.totalorder %s14, 3
      %p239 = pnand %p237, %p238
      %p240 = pneg %p239
      // Predicated region
      $region41: #{tpu_custom_call.1} parent=5 // pred_check
        _
      $region42: #{tpu_custom_call.1} parent=5 // pred_check_branch
        %242 = sbr.rel (%p239) target = $region44
      $region43: #{tpu_custom_call.1} parent=5 // pred_region
        %s243 = ssub.s32 %s14, 1
        // Predicated region
        $region45: #{tpu_custom_call.1} parent=43 // pred_check
          %p244 = pneg %p136
        $region46: #{tpu_custom_call.1} parent=43 // pred_check_branch
          %246 = sbr.rel (%p244) target = $region48
        $region47: #{tpu_custom_call.1} parent=43 // pred_region
          %248 = dma.done [#allocation4], 512
        $region48: #{tpu_custom_call.1} parent=43 // pred_fallthru
          _
        %s249 = smul.u32 8, %s24
        %p250 = scmp.lt.s32.totalorder %s249, 7
        %s251 = scalar_select %p250, %s249, 7
        %s252 = smul.addr %s251, 8
        %s253 = scalar_lea.vmem %s0, %s252
        %p254 = pneg %p52
        %p255 = pneg %p49
        %p256 = pneg %p73
        %p257 = pneg %p70
        %p258 = pneg %p94
        %p259 = pneg %p91
        %p260 = pneg %p115
        %p261 = pneg %p112
        %p262 = pneg %p136
        %p263 = pneg %p133
        %p264 = pneg %p157
        %p265 = pneg %p154
        %p266 = pneg %p183
        %p267 = pneg %p180
        %s268 = smul.u32 8, %s24
        %p269 = scmp.lt.s32.totalorder %s268, 7
        %s270 = scalar_select %p269, %s268, 7
        %s271 = smul.addr %s270, 8
        %s272 = scalar_lea.vmem %s0, %s271
        %s273 = smul.u32 8, %s24
        %s274 = smul.u32 8, %s24
        %p275 = scmp.eq.s32.totalorder %s23, 0
        %p276 = scmp.eq.s32.totalorder %s24, 0
        %p277 = pnand %p275, %p276
        %p278 = pneg %p277
        // Predicated region
        $region49: #{tpu_custom_call.1} parent=43 // pred_check
          _
        $region50: #{tpu_custom_call.1} parent=43 // pred_check_branch
          %280 = sbr.rel (%p277) target = $region52
        $region51: #{tpu_custom_call.1} parent=43 // pred_region
          %v281 = vld [vmem:[%s1] sm:$0xff]
          %v282 = vld [vmem:[%s1 + $0x8] sm:$0xff]
          %v283 = vld [vmem:[%s1 + $0x10] sm:$0xff]
          %v284 = vld [vmem:[%s1 + $0x18] sm:$0xff]
          %v285 = vld [vmem:[%s1 + $0x20] sm:$0xff]
          %v286 = vld [vmem:[%s1 + $0x28] sm:$0xff]
          %v287 = vld [vmem:[%s1 + $0x30] sm:$0xff]
          %v288 = vld [vmem:[%s1 + $0x38] sm:$0xff]
          %vm289 = vcmask 261120
          %290 = vst.msk [vmem:[#allocation2] sm:$0xff] %vm289, %v281
          %291 = vst.msk [vmem:[#allocation2 + $0x8] sm:$0xff] %vm289, %v282
          %292 = vst.msk [vmem:[#allocation2 + $0x10] sm:$0xff] %vm289, %v283
          %293 = vst.msk [vmem:[#allocation2 + $0x18] sm:$0xff] %vm289, %v284
          %294 = vst.msk [vmem:[#allocation2 + $0x20] sm:$0xff] %vm289, %v285
          %295 = vst.msk [vmem:[#allocation2 + $0x28] sm:$0xff] %vm289, %v286
          %296 = vst.msk [vmem:[#allocation2 + $0x30] sm:$0xff] %vm289, %v287
          %297 = vst.msk [vmem:[#allocation2 + $0x38] sm:$0xff] %vm289, %v288
        $region52: #{tpu_custom_call.1} parent=43 // pred_fallthru
          _
        %p298 = scmp.lt.s32.totalorder %s23, 0
        %s299 = ssub.s32 0, %s23
        %s300 = scalar_select %p298, %s299, %s23
        %s301 = sand.u32 %s300, 1
        %s302 = ssub.s32 0, %s301
        %s303 = scalar_select %p298, %s302, %s301
        %p304 = scmp.ne.s32.totalorder %s303, 0
        %p305 = scmp.lt.s32.totalorder %s303, 0
        %p306 = pnand %p305, %p304
        %p307 = pneg %p306
        %s308 = sadd.s32 %s303, 2
        %s309 = scalar_select %p307, %s308, %s303
        %s310 = smul.u32 %s309, 64
        %s311 = scalar_lea.vmem [#allocation2], %s310
        %v312 = vld [vmem:[%s311] sm:$0xff]
        %v313 = vld [vmem:[%s311 + $0x8] sm:$0xff]
        %v314 = vld [vmem:[%s311 + $0x10] sm:$0xff]
        %v315 = vld [vmem:[%s311 + $0x18] sm:$0xff]
        %v316 = vld [vmem:[%s311 + $0x20] sm:$0xff]
        %v317 = vld [vmem:[%s311 + $0x28] sm:$0xff]
        %v318 = vld [vmem:[%s311 + $0x30] sm:$0xff]
        %v319 = vld [vmem:[%s311 + $0x38] sm:$0xff]
        %v320 = vld [vmem:[%s272] sm:$0xff]
        %v321 = vld [vmem:[%s272 + $0x8] sm:$0xff]
        %v322 = vld [vmem:[%s272 + $0x10] sm:$0xff]
        %v323 = vld [vmem:[%s272 + $0x18] sm:$0xff]
        %v324 = vld [vmem:[%s272 + $0x20] sm:$0xff]
        %v325 = vld [vmem:[%s272 + $0x28] sm:$0xff]
        %v326 = vld [vmem:[%s272 + $0x30] sm:$0xff]
        %v327 = vld [vmem:[%s272 + $0x38] sm:$0xff]
        %vm328 = vcmask 523264
        %v330 = vsel %vm328, %v320, 0
        %v333 = vsel %vm328, %v321, 0
        %v336 = vsel %vm328, %v322, 0
        %v339 = vsel %vm328, %v323, 0
        %v342 = vsel %vm328, %v324, 0
        %v345 = vsel %vm328, %v325, 0
        %v348 = vsel %vm328, %v326, 0
        %v351 = vsel %vm328, %v327, 0
        %353 = vmatpush.msra.mxu0 0.0
        %354 = vmatpush.msra.mxu0 0.0
        %355 = vmatpush.msra.mxu0 0.0
        %356 = vmatpush.msra.mxu0 0.0
        %357 = vmatpush.msra.mxu0 0.0
        %358 = vmatpush.msra.mxu0 0.0
        %359 = vmatpush.msra.mxu0 0.0
        %360 = vmatpush.msra.mxu0 0.0
        %361 = vmatpush.msra.mxu0 %v319
        %362 = vmatpush.msra.mxu0 %v318
        %363 = vmatpush.msra.mxu0 %v317
        %364 = vmatpush.msra.mxu0 %v316
        %365 = vmatpush.msra.mxu0 %v315
        %366 = vmatpush.msra.mxu0 %v314
        %367 = vmatpush.msra.mxu0 %v313
        %368 = vmatpush.msra.mxu0 %v312
        %369 = vmatmul.f32.gmra.mxu0 %v330
        %v370 = vpop.f32.mrf.mxu0
        %v371 = vadd.f32 0.0, %v370
        %372 = vmatmul.f32.gmra.mxu0 %v333
        %v373 = vpop.f32.mrf.mxu0
        %v374 = vadd.f32 0.0, %v373
        %375 = vmatmul.f32.gmra.mxu0 %v336
        %v376 = vpop.f32.mrf.mxu0
        %v377 = vadd.f32 0.0, %v376
        %378 = vmatmul.f32.gmra.mxu0 %v339
        %v379 = vpop.f32.mrf.mxu0
        %v380 = vadd.f32 0.0, %v379
        %381 = vmatmul.f32.gmra.mxu0 %v342
        %v382 = vpop.f32.mrf.mxu0
        %v383 = vadd.f32 0.0, %v382
        %384 = vmatmul.f32.gmra.mxu0 %v345
        %v385 = vpop.f32.mrf.mxu0
        %v386 = vadd.f32 0.0, %v385
        %387 = vmatmul.f32.gmra.mxu0 %v348
        %v388 = vpop.f32.mrf.mxu0
        %v389 = vadd.f32 0.0, %v388
        %390 = vmatmul.f32.gmra.mxu0 %v351
        %v391 = vpop.f32.mrf.mxu0
        %v392 = vadd.f32 0.0, %v391
        %393 = vdwg.mxu0
        %p394 = scmp.lt.s32.totalorder %s23, 1
        // Predicated region
        $region53: #{tpu_custom_call.1} parent=43 // pred_check
          %p395 = pneg %p394
        $region54: #{tpu_custom_call.1} parent=43 // pred_check_branch
          %397 = sbr.rel (%p395) target = $region56
        $region55: #{tpu_custom_call.1} parent=43 // pred_region
          %s398 = ssub.s32 1, %s309
          %s399 = smul.u32 %s398, 64
          %s400 = smul.u32 %s24, 64
          %s401 = sadd.s32 %s399, %s400
          %s402 = scalar_lea.vmem [#allocation2], %s401
          %vm403 = vcmask 261120
          %404 = vst.msk [vmem:[%s402] sm:$0xff] %vm403, %v371
          %405 = vst.msk [vmem:[%s402 + $0x8] sm:$0xff] %vm403, %v374
          %406 = vst.msk [vmem:[%s402 + $0x10] sm:$0xff] %vm403, %v377
          %407 = vst.msk [vmem:[%s402 + $0x18] sm:$0xff] %vm403, %v380
          %408 = vst.msk [vmem:[%s402 + $0x20] sm:$0xff] %vm403, %v383
          %409 = vst.msk [vmem:[%s402 + $0x28] sm:$0xff] %vm403, %v386
          %410 = vst.msk [vmem:[%s402 + $0x30] sm:$0xff] %vm403, %v389
          %411 = vst.msk [vmem:[%s402 + $0x38] sm:$0xff] %vm403, %v392
        $region56: #{tpu_custom_call.1} parent=43 // pred_fallthru
          _
        %p412 = scmp.eq.s32.totalorder %s23, 1
        // Predicated region
        $region57: #{tpu_custom_call.1} parent=43 // pred_check
          %p413 = pneg %p412
        $region58: #{tpu_custom_call.1} parent=43 // pred_check_branch
          %415 = sbr.rel (%p413) target = $region60
        $region59: #{tpu_custom_call.1} parent=43 // pred_region
          %v416 = vld [vmem:[%s2] sm:$0xff]
          %v417 = vld [vmem:[%s2 + $0x8] sm:$0xff]
          %v418 = vld [vmem:[%s2 + $0x10] sm:$0xff]
          %v419 = vld [vmem:[%s2 + $0x18] sm:$0xff]
          %v420 = vld [vmem:[%s3] sm:$0x1]
          %v422 = vperm.slane %v420, 0
          %vm424 = vcmask 261120
          %v426 = vsel %vm424, %v371, 0
          %v429 = vsel %vm424, %v374, 0
          %v432 = vsel %vm424, %v377, 0
          %v435 = vsel %vm424, %v380, 0
          %v438 = vsel %vm424, %v383, 0
          %v441 = vsel %vm424, %v386, 0
          %v444 = vsel %vm424, %v389, 0
          %v447 = vsel %vm424, %v392, 0
          %449 = vmatpush.msra.mxu0 0.0
          %450 = vmatpush.msra.mxu0 0.0
          %451 = vmatpush.msra.mxu0 0.0
          %452 = vmatpush.msra.mxu0 0.0
          %453 = vmatpush.msra.mxu0 0.0
          %454 = vmatpush.msra.mxu0 0.0
          %455 = vmatpush.msra.mxu0 0.0
          %456 = vmatpush.msra.mxu0 0.0
          %457 = vmatpush.msra.mxu0 0.0
          %458 = vmatpush.msra.mxu0 0.0
          %459 = vmatpush.msra.mxu0 0.0
          %460 = vmatpush.msra.mxu0 0.0
          %461 = vmatpush.msra.mxu0 %v419
          %462 = vmatpush.msra.mxu0 %v418
          %463 = vmatpush.msra.mxu0 %v417
          %464 = vmatpush.msra.mxu0 %v416
          %465 = vmatmul.f32.gmra.mxu0 %v426
          %v466 = vpop.f32.mrf.mxu0
          %v467 = vadd.f32 %v422, %v466
          %468 = vmatmul.f32.gmra.mxu0 %v429
          %v469 = vpop.f32.mrf.mxu0
          %v470 = vadd.f32 %v422, %v469
          %471 = vmatmul.f32.gmra.mxu0 %v432
          %v472 = vpop.f32.mrf.mxu0
          %v473 = vadd.f32 %v422, %v472
          %474 = vmatmul.f32.gmra.mxu0 %v435
          %v475 = vpop.f32.mrf.mxu0
          %v476 = vadd.f32 %v422, %v475
          %477 = vmatmul.f32.gmra.mxu0 %v438
          %v478 = vpop.f32.mrf.mxu0
          %v479 = vadd.f32 %v422, %v478
          %480 = vmatmul.f32.gmra.mxu0 %v441
          %v481 = vpop.f32.mrf.mxu0
          %v482 = vadd.f32 %v422, %v481
          %483 = vmatmul.f32.gmra.mxu0 %v444
          %v484 = vpop.f32.mrf.mxu0
          %v485 = vadd.f32 %v422, %v484
          %486 = vmatmul.f32.gmra.mxu0 %v447
          %v487 = vpop.f32.mrf.mxu0
          %v488 = vadd.f32 %v422, %v487
          %489 = vdwg.mxu0
          %v490 = vmax.f32 %v467, 0.0
          %v491 = vmax.f32 %v470, 0.0
          %v492 = vmax.f32 %v473, 0.0
          %v493 = vmax.f32 %v476, 0.0
          %v494 = vmax.f32 %v479, 0.0
          %v495 = vmax.f32 %v482, 0.0
          %v496 = vmax.f32 %v485, 0.0
          %v497 = vmax.f32 %v488, 0.0
          %v498 = vld [vmem:[#allocation3] sm:$0xff]
          %v499 = vld [vmem:[#allocation3 + $0x8] sm:$0xff]
          %v500 = vld [vmem:[#allocation3 + $0x10] sm:$0xff]
          %v501 = vld [vmem:[#allocation3 + $0x18] sm:$0xff]
          %v502 = vld [vmem:[%s5] sm:$0x1]
          %v504 = vperm.slane %v502, 0
          %v507 = vsel %vm424, %v490, 0
          %v510 = vsel %vm424, %v491, 0
          %v513 = vsel %vm424, %v492, 0
          %v516 = vsel %vm424, %v493, 0
          %v519 = vsel %vm424, %v494, 0
          %v522 = vsel %vm424, %v495, 0
          %v525 = vsel %vm424, %v496, 0
          %v528 = vsel %vm424, %v497, 0
          %530 = vmatpush.msra.mxu0 0.0
          %531 = vmatpush.msra.mxu0 0.0
          %532 = vmatpush.msra.mxu0 0.0
          %533 = vmatpush.msra.mxu0 0.0
          %534 = vmatpush.msra.mxu0 0.0
          %535 = vmatpush.msra.mxu0 0.0
          %536 = vmatpush.msra.mxu0 0.0
          %537 = vmatpush.msra.mxu0 0.0
          %538 = vmatpush.msra.mxu0 0.0
          %539 = vmatpush.msra.mxu0 0.0
          %540 = vmatpush.msra.mxu0 0.0
          %541 = vmatpush.msra.mxu0 0.0
          %542 = vmatpush.msra.mxu0 %v501
          %543 = vmatpush.msra.mxu0 %v500
          %544 = vmatpush.msra.mxu0 %v499
          %545 = vmatpush.msra.mxu0 %v498
          %546 = vmatmul.f32.gmra.mxu0 %v507
          %v547 = vpop.f32.mrf.mxu0
          %v548 = vadd.f32 %v504, %v547
          %549 = vmatmul.f32.gmra.mxu0 %v510
          %v550 = vpop.f32.mrf.mxu0
          %v551 = vadd.f32 %v504, %v550
          %552 = vmatmul.f32.gmra.mxu0 %v513
          %v553 = vpop.f32.mrf.mxu0
          %v554 = vadd.f32 %v504, %v553
          %555 = vmatmul.f32.gmra.mxu0 %v516
          %v556 = vpop.f32.mrf.mxu0
          %v557 = vadd.f32 %v504, %v556
          %558 = vmatmul.f32.gmra.mxu0 %v519
          %v559 = vpop.f32.mrf.mxu0
          %v560 = vadd.f32 %v504, %v559
          %561 = vmatmul.f32.gmra.mxu0 %v522
          %v562 = vpop.f32.mrf.mxu0
          %v563 = vadd.f32 %v504, %v562
          %564 = vmatmul.f32.gmra.mxu0 %v525
          %v565 = vpop.f32.mrf.mxu0
          %v566 = vadd.f32 %v504, %v565
          %567 = vmatmul.f32.gmra.mxu0 %v528
          %v568 = vpop.f32.mrf.mxu0
          %v569 = vadd.f32 %v504, %v568
          %570 = vdwg.mxu0
          %571 = vmax.xlane.f32.xlu0 %v548
          %v572 = vpop.xlane.xlu0 %571
          %573 = vmax.xlane.f32.xlu0 %v551
          %v574 = vpop.xlane.xlu0 %573
          %575 = vmax.xlane.f32.xlu0 %v554
          %v576 = vpop.xlane.xlu0 %575
          %577 = vmax.xlane.f32.xlu0 %v557
          %v578 = vpop.xlane.xlu0 %577
          %579 = vmax.xlane.f32.xlu0 %v560
          %v580 = vpop.xlane.xlu0 %579
          %581 = vmax.xlane.f32.xlu0 %v563
          %v582 = vpop.xlane.xlu0 %581
          %583 = vmax.xlane.f32.xlu0 %v566
          %v584 = vpop.xlane.xlu0 %583
          %585 = vmax.xlane.f32.xlu0 %v569
          %v586 = vpop.xlane.xlu0 %585
          %v587 = vsub.f32 %v548, %v572
          %v588 = vsub.f32 %v551, %v574
          %v589 = vsub.f32 %v554, %v576
          %v590 = vsub.f32 %v557, %v578
          %v591 = vsub.f32 %v560, %v580
          %v592 = vsub.f32 %v563, %v582
          %v593 = vsub.f32 %v566, %v584
          %v594 = vsub.f32 %v569, %v586
          %v595 = vmul.f32 %v587, 1.442695
          %v596 = vpow.pop %v595
          %v597 = vmul.f32 %v588, 1.442695
          %v598 = vpow.pop %v597
          %v599 = vmul.f32 %v589, 1.442695
          %v600 = vpow.pop %v599
          %v601 = vmul.f32 %v590, 1.442695
          %v602 = vpow.pop %v601
          %v603 = vmul.f32 %v591, 1.442695
          %v604 = vpow.pop %v603
          %v605 = vmul.f32 %v592, 1.442695
          %v606 = vpow.pop %v605
          %v607 = vmul.f32 %v593, 1.442695
          %v608 = vpow.pop %v607
          %v609 = vmul.f32 %v594, 1.442695
          %v610 = vpow.pop %v609
          %611 = vadd.xlane.f32.xlu0 %v596
          %v612 = vpop.xlane.xlu0 %611
          %613 = vadd.xlane.f32.xlu0 %v598
          %v614 = vpop.xlane.xlu0 %613
          %615 = vadd.xlane.f32.xlu0 %v600
          %v616 = vpop.xlane.xlu0 %615
          %617 = vadd.xlane.f32.xlu0 %v602
          %v618 = vpop.xlane.xlu0 %617
          %619 = vadd.xlane.f32.xlu0 %v604
          %v620 = vpop.xlane.xlu0 %619
          %621 = vadd.xlane.f32.xlu0 %v606
          %v622 = vpop.xlane.xlu0 %621
          %623 = vadd.xlane.f32.xlu0 %v608
          %v624 = vpop.xlane.xlu0 %623
          %625 = vadd.xlane.f32.xlu0 %v610
          %v626 = vpop.xlane.xlu0 %625
          %v627 = vlog2.pop %v612
          %v628 = vmul.f32 %v627, 0.6931472
          %v629 = vlog2.pop %v614
          %v630 = vmul.f32 %v629, 0.6931472
          %v631 = vlog2.pop %v616
          %v632 = vmul.f32 %v631, 0.6931472
          %v633 = vlog2.pop %v618
          %v634 = vmul.f32 %v633, 0.6931472
          %v635 = vlog2.pop %v620
          %v636 = vmul.f32 %v635, 0.6931472
          %v637 = vlog2.pop %v622
          %v638 = vmul.f32 %v637, 0.6931472
          %v639 = vlog2.pop %v624
          %v640 = vmul.f32 %v639, 0.6931472
          %v641 = vlog2.pop %v626
          %v642 = vmul.f32 %v641, 0.6931472
          %v643 = vsub.f32 %v587, %v628
          %v644 = vsub.f32 %v588, %v630
          %v645 = vsub.f32 %v589, %v632
          %v646 = vsub.f32 %v590, %v634
          %v647 = vsub.f32 %v591, %v636
          %v648 = vsub.f32 %v592, %v638
          %v649 = vsub.f32 %v593, %v640
          %v650 = vsub.f32 %v594, %v642
          %651 = vst [vmem:[#allocation6] sm:$0xff] %v643
          %652 = vst [vmem:[#allocation6 + $0x8] sm:$0xff] %v644
          %653 = vst [vmem:[#allocation6 + $0x10] sm:$0xff] %v645
          %654 = vst [vmem:[#allocation6 + $0x18] sm:$0xff] %v646
          %655 = vst [vmem:[#allocation6 + $0x20] sm:$0xff] %v647
          %656 = vst [vmem:[#allocation6 + $0x28] sm:$0xff] %v648
          %657 = vst [vmem:[#allocation6 + $0x30] sm:$0xff] %v649
          %658 = vst [vmem:[#allocation6 + $0x38] sm:$0xff] %v650
        $region60: #{tpu_custom_call.1} parent=43 // pred_fallthru
          _
        // Predicated region
        $region61: #{tpu_custom_call.1} parent=43 // pred_check
          %p659 = pneg %p180
        $region62: #{tpu_custom_call.1} parent=43 // pred_check_branch
          %661 = sbr.rel (%p659) target = $region64
        $region63: #{tpu_custom_call.1} parent=43 // pred_region
          %s662 = smul.u32 8, %s24
          %664 = vsyncadd [#allocation5], 0
          %s665 = smul.addr %s662, 8
          %s666 = scalar_lea.hbm %s6, %s665
          %s667 = sshll.u32 [#allocation6], 4
          %s668 = int_to_ptr.vmem [resolvable:$true] %s667
          %s669 = sshll.u32 %s666, 4
          %s670 = int_to_ptr.hbm [resolvable:$true] %s669
          %675 = dma.vmem_to_hbm [thread:$0]  %s668, 1024, %s670, [#allocation5], 128, 128, 8
        $region64: #{tpu_custom_call.1} parent=43 // pred_fallthru
          _
        // Predicated region
        $region65: #{tpu_custom_call.1} parent=43 // pred_check
          %p676 = pneg %p180
        $region66: #{tpu_custom_call.1} parent=43 // pred_check_branch
          %678 = sbr.rel (%p676) target = $region68
        $region67: #{tpu_custom_call.1} parent=43 // pred_region
          %680 = dma.done [#allocation5], 1024
        $region68: #{tpu_custom_call.1} parent=43 // pred_fallthru
          _
      $region44: #{tpu_custom_call.1} parent=5 // pred_fallthru
        _
      %p681 = scmp.le.s32.totalorder 2, %s14
      // Predicated region
      $region69: #{tpu_custom_call.1} parent=5 // pred_check
        %p682 = pneg %p681
      $region70: #{tpu_custom_call.1} parent=5 // pred_check_branch
        %684 = sbr.rel (%p682) target = $region72
      $region71: #{tpu_custom_call.1} parent=5 // pred_region
        %s685 = ssub.s32 %s14, 2
      $region72: #{tpu_custom_call.1} parent=5 // pred_fallthru
        _
    $region6: #{tpu_custom_call.1} parent=1 // loop_footer
      %s18 = sadd.s32 1, %s14
    $region7: #{tpu_custom_call.1} parent=1 // loop_footer_branch
      %13 = sbr.rel target = $region3
    $region8: #{tpu_custom_call.1} parent=1 // loop_exit
      _
    %686 = vsyncpa [#allocation4], 1
    %s687 = scalar_lea.sflag [#allocation4], 1
    %688 = vsyncpa %s687, 1
    %689 = vsyncpa [#allocation5], 1
    %s690 = scalar_lea.sflag [#allocation5], 1
    %691 = vsyncpa %s690, 1

</llo_original>
